<compile_context>
chip_gen: v7x
topology: tpu7x:2x2x1
jax: 0.10.0
libtpu: 0.0.40
codegen_flags: <defaults>
</compile_context>

<pallas_src>
import jax
import jax.numpy as jnp
from jax.experimental import pallas as pl
from jax.experimental.pallas import tpu as pltpu


def _model_action_kernel(x_ref, w1t_ref, b1_ref, w2t_ref, b2_ref,
                         wht_ref, bh_ref, out_ref):
    # x: (3, TB) f32, batch on lanes.  Cast once to bf16 for the MXU.
    x = x_ref[...].astype(w1t_ref.dtype)

    # ---- Layer 1: Linear(3, 64) + ReLU  ->  (64, TB).  MXU, f32 accumulate.
    h = jnp.dot(w1t_ref[...], x, preferred_element_type=jnp.float32)
    h = jnp.maximum(h + b1_ref[...], 0.0)

    # ---- Layer 2: Linear(64, 64) + ReLU  ->  (64, TB).
    h = jnp.dot(w2t_ref[...], h.astype(w2t_ref.dtype),
                preferred_element_type=jnp.float32)
    h = jnp.maximum(h + b2_ref[...], 0.0)

    # ---- Fused heads: (2, 64) @ (64, TB) -> (2, TB).  Row 0 = mu, row 1 = sigma.
    y = jnp.dot(wht_ref[...], h.astype(wht_ref.dtype),
                preferred_element_type=jnp.float32) + bh_ref[...]
    t = jnp.tanh(y)
    # mu = tanh(y0); sigma = exp(tanh(y1)).  Select by sublane row (exp on the
    # extra row is a cheap EUP op); single lane-dense full-tile store.
    row = jax.lax.broadcasted_iota(jnp.int32, t.shape, dimension=0)
    out_ref[...] = jnp.where(row == 0, t, jnp.exp(t)).astype(out_ref.dtype)


def prepare_params(params):
    """One-time parameter prep (hoisted out of the per-call hot path):
    transposed weights, fused heads, bf16 MXU casts, column biases."""
    w1, b1, w2, b2, wm, bm, ws, bs = params
    bf = jnp.bfloat16
    w1t = jnp.asarray(w1).T.astype(bf)                        # (64, 3)
    b1c = jnp.asarray(b1).reshape(64, 1).astype(jnp.float32)  # (64, 1)
    w2t = jnp.asarray(w2).T.astype(bf)                        # (64, 64)
    b2c = jnp.asarray(b2).reshape(64, 1).astype(jnp.float32)  # (64, 1)
    wht = jnp.concatenate([wm, ws], axis=1).T.astype(bf)      # (2, 64)
    bhc = jnp.concatenate([bm, bs], axis=1).reshape(2, 1).astype(jnp.float32)
    return (w1t, b1c, w2t, b2c, wht, bhc)


def _pick_tile(b128, cap):
    """Tile size: multiple of 128, <= cap, >=2 grid steps when batch allows
    (v7x dual TensorCore), tail padding kept under ~12.5%."""
    tb = max(128, min(cap, b128) // 128 * 128)
    if b128 >= 256:  # leave work for the second TensorCore on v7x
        tb = min(tb, max(128, (b128 // 2) // 128 * 128))
    while tb > 128 and (pl.cdiv(b128, tb) * tb - b128) * 8 > b128:
        tb -= 128
    return tb


def model_action_forward(state, prepared, *, tb_cap=2048):
    """state: (B, 3) float32.  Returns (mu, sigma), each (B, 1) float32."""
    w1t, b1c, w2t, b2c, wht, bhc = prepared
    B = state.shape[0]

    b128 = ((B + 127) // 128) * 128
    TB = _pick_tile(b128, tb_cap)
    grid = pl.cdiv(b128, TB)
    B_pad = grid * TB

    # Layout plumbing in the wrapper (single cheap XLA transpose + pad) so the
    # kernel sees lane-dense blocks.
    x_t = state.T                                   # (3, B), batch on lanes
    if B_pad != B:
        x_t = jnp.pad(x_t, ((0, 0), (0, B_pad - B)))

    def full(a):
        return pl.BlockSpec(a.shape, lambda i: (0, 0))

    cost = pl.CostEstimate(
        flops=2 * B_pad * (3 * 64 + 64 * 64 + 64 * 2),
        transcendentals=4 * B_pad,                   # tanh + exp on 2 rows each
        bytes_accessed=(B_pad * (3 + 2) * 4
                        + w1t.size * 2 + b1c.size * 4
                        + w2t.size * 2 + b2c.size * 4
                        + wht.size * 2 + bhc.size * 4),
    )

    out = pl.pallas_call(
        _model_action_kernel,
        grid=(grid,),
        in_specs=[pl.BlockSpec((3, TB), lambda i: (0, i)),
                  full(w1t), full(b1c), full(w2t), full(b2c),
                  full(wht), full(bhc)],
        out_specs=pl.BlockSpec((2, TB), lambda i: (0, i)),
        out_shape=jax.ShapeDtypeStruct((2, B_pad), jnp.float32),
        compiler_params=pltpu.CompilerParams(
            dimension_semantics=("parallel",)),
        cost_estimate=cost,
    )(x_t, w1t, b1c, w2t, b2c, wht, bhc)

    mu = out[0, :B, None]                            # (B, 1)
    sigma = out[1, :B, None]                         # (B, 1)
    return mu, sigma


def init_params(key):
    """Deterministic init mimicking PyTorch Linear default U(-1/sqrt(fan_in), ..)."""
    def linear(k, fan_in, fan_out):
        kw, kb = jax.random.split(k)
        bound = 1.0 / jnp.sqrt(fan_in)
        w = jax.random.uniform(kw, (fan_in, fan_out), jnp.float32, -bound, bound)
        b = jax.random.uniform(kb, (1, fan_out), jnp.float32, -bound, bound)
        return w, b

    k1, k2, k3, k4 = jax.random.split(key, 4)
    w1, b1 = linear(k1, 3, 64)
    w2, b2 = linear(k2, 64, 64)
    wm, bm = linear(k3, 64, 1)
    ws, bs = linear(k4, 64, 1)
    return (w1, b1, w2, b2, wm, bm, ws, bs)


def _reference_forward_f32(state, params):
    """Pure float32 reference (exact PyTorch semantics)."""
    w1, b1, w2, b2, wm, bm, ws, bs = params
    h = jnp.maximum(state @ w1 + b1, 0.0)
    h = jnp.maximum(h @ w2 + b2, 0.0)
    mu = jnp.tanh(h @ wm + bm)
    sigma = jnp.exp(jnp.tanh(h @ ws + bs))
    return mu, sigma


def _reference_forward_bf16(state, params):
    """Reference replicating the kernel's bf16-input / f32-accumulate matmuls."""
    w1, b1, w2, b2, wm, bm, ws, bs = params
    bf = jnp.bfloat16
    h = jnp.dot(state.astype(bf), w1.astype(bf),
                preferred_element_type=jnp.float32) + b1
    h = jnp.maximum(h, 0.0)
    h = jnp.dot(h.astype(bf), w2.astype(bf),
                preferred_element_type=jnp.float32) + b2
    h = jnp.maximum(h, 0.0)
    wh = jnp.concatenate([wm, ws], axis=1).astype(bf)
    bh = jnp.concatenate([bm, bs], axis=1)
    y = jnp.dot(h.astype(bf), wh, preferred_element_type=jnp.float32) + bh
    t = jnp.tanh(y)
    return t[:, 0:1], jnp.exp(t[:, 1:2])


if __name__ == "__main__":
    key = jax.random.PRNGKey(0)
    kp, kx1, kx2 = jax.random.split(key, 3)

    params = init_params(kp)
    prepared = prepare_params(params)

    # Small deterministic input consistent with the module: batch=8, state_dim=3.
    state = jax.random.normal(kx1, (8, 3), jnp.float32)
    mu, sigma = model_action_forward(state, prepared)
    jax.block_until_ready((mu, sigma))
    assert mu.shape == (8, 1) and sigma.shape == (8, 1)

    # Tight check against a reference matching the kernel's bf16/f32 matmuls.
    mu_b, sigma_b = _reference_forward_bf16(state, params)
    assert jnp.allclose(mu, mu_b, atol=1e-4, rtol=1e-4)
    assert jnp.allclose(sigma, sigma_b, atol=1e-4, rtol=1e-4)

    # Loose check against the pure-f32 PyTorch-equivalent reference
    # (difference bounded by bf16 rounding of the MXU inputs).
    mu_f, sigma_f = _reference_forward_f32(state, params)
    assert jnp.allclose(mu, mu_f, atol=3e-2, rtol=3e-2)
    assert jnp.allclose(sigma, sigma_f, atol=3e-2, rtol=3e-2)

    # Second batch with a non-multiple-of-128 size to exercise tiling + tail pad.
    state2 = jax.random.normal(kx2, (300, 3), jnp.float32)
    mu2, sigma2 = model_action_forward(state2, prepared)
    jax.block_until_ready((mu2, sigma2))
    assert mu2.shape == (300, 1) and sigma2.shape == (300, 1)
    mu2_b, sigma2_b = _reference_forward_bf16(state2, params)
    assert jnp.allclose(mu2, mu2_b, atol=1e-4, rtol=1e-4)
    assert jnp.allclose(sigma2, sigma2_b, atol=1e-4, rtol=1e-4)

    print("KERNEL_OK")
</pallas_src>

<mosaic_0001>
module attributes {stable_mosaic.version = 11 : i64} {
  func.func @_model_action_kernel(%arg0: i32, %arg1: memref<3x128xf32, #tpu.memory_space<vmem>>, %arg2: memref<64x3xbf16, #tpu.memory_space<vmem>>, %arg3: memref<64x1xf32, #tpu.memory_space<vmem>>, %arg4: memref<64x64xbf16, #tpu.memory_space<vmem>>, %arg5: memref<64x1xf32, #tpu.memory_space<vmem>>, %arg6: memref<2x64xbf16, #tpu.memory_space<vmem>>, %arg7: memref<2x1xf32, #tpu.memory_space<vmem>>, %arg8: memref<2x128xf32, #tpu.memory_space<vmem>>) attributes {dimension_semantics = [#tpu.dimension_semantics<parallel>], iteration_bounds = array<i64: 1>, scalar_prefetch = 0 : i64, scratch_operands = 0 : i64, tpu.core_type = #tpu.core_type<tc>, window_params = [{transform_indices = @transform_0, window_bounds = array<i64: 3, 128>}, {pipeline_mode = #tpu.pipeline_mode<synchronous>, transform_indices = @transform_1, window_bounds = array<i64: 64, 3>}, {pipeline_mode = #tpu.pipeline_mode<synchronous>, transform_indices = @transform_2, window_bounds = array<i64: 64, 1>}, {pipeline_mode = #tpu.pipeline_mode<synchronous>, transform_indices = @transform_3, window_bounds = array<i64: 64, 64>}, {pipeline_mode = #tpu.pipeline_mode<synchronous>, transform_indices = @transform_4, window_bounds = array<i64: 64, 1>}, {pipeline_mode = #tpu.pipeline_mode<synchronous>, transform_indices = @transform_5, window_bounds = array<i64: 2, 64>}, {pipeline_mode = #tpu.pipeline_mode<synchronous>, transform_indices = @transform_6, window_bounds = array<i64: 2, 1>}, {transform_indices = @transform_7, window_bounds = array<i64: 2, 128>}]} {
    %c0 = arith.constant 0 : index
    %c0_0 = arith.constant 0 : index
    %0 = vector.load %arg1[%c0, %c0_0] : memref<3x128xf32, #tpu.memory_space<vmem>>, vector<3x128xf32>
    %1 = arith.truncf %0 : vector<3x128xf32> to vector<3x128xbf16>
    %c0_1 = arith.constant 0 : index
    %c0_2 = arith.constant 0 : index
    %2 = vector.load %arg2[%c0_1, %c0_2] : memref<64x3xbf16, #tpu.memory_space<vmem>>, vector<64x3xbf16>
    %cst = arith.constant dense<0.000000e+00> : vector<64x128xf32>
    %3 = tpu.matmul %2, %1, %cst {dimension_numbers = #tpu.dot_dimension_numbers<[1], [0], [0], [1], [0, 0, 1, 1], [], []>} : vector<64x3xbf16>, vector<3x128xbf16>, vector<64x128xf32> -> vector<64x128xf32>
    %c0_3 = arith.constant 0 : index
    %c0_4 = arith.constant 0 : index
    %4 = vector.load %arg3[%c0_3, %c0_4] : memref<64x1xf32, #tpu.memory_space<vmem>>, vector<64x1xf32>
    %5 = vector.broadcast %4 : vector<64x1xf32> to vector<64x128xf32>
    %6 = arith.addf %3, %5 : vector<64x128xf32>
    %cst_5 = arith.constant 0.000000e+00 : f32
    %7 = vector.broadcast %cst_5 : f32 to vector<64x128xf32>
    %8 = arith.maximumf %6, %7 : vector<64x128xf32>
    %c0_6 = arith.constant 0 : index
    %c0_7 = arith.constant 0 : index
    %9 = vector.load %arg4[%c0_6, %c0_7] : memref<64x64xbf16, #tpu.memory_space<vmem>>, vector<64x64xbf16>
    %10 = arith.truncf %8 : vector<64x128xf32> to vector<64x128xbf16>
    %cst_8 = arith.constant dense<0.000000e+00> : vector<64x128xf32>
    %11 = tpu.matmul %9, %10, %cst_8 {dimension_numbers = #tpu.dot_dimension_numbers<[1], [0], [0], [1], [0, 0, 1, 1], [], []>} : vector<64x64xbf16>, vector<64x128xbf16>, vector<64x128xf32> -> vector<64x128xf32>
    %c0_9 = arith.constant 0 : index
    %c0_10 = arith.constant 0 : index
    %12 = vector.load %arg5[%c0_9, %c0_10] : memref<64x1xf32, #tpu.memory_space<vmem>>, vector<64x1xf32>
    %13 = vector.broadcast %12 : vector<64x1xf32> to vector<64x128xf32>
    %14 = arith.addf %11, %13 : vector<64x128xf32>
    %cst_11 = arith.constant 0.000000e+00 : f32
    %15 = vector.broadcast %cst_11 : f32 to vector<64x128xf32>
    %16 = arith.maximumf %14, %15 : vector<64x128xf32>
    %c0_12 = arith.constant 0 : index
    %c0_13 = arith.constant 0 : index
    %17 = vector.load %arg6[%c0_12, %c0_13] : memref<2x64xbf16, #tpu.memory_space<vmem>>, vector<2x64xbf16>
    %18 = arith.truncf %16 : vector<64x128xf32> to vector<64x128xbf16>
    %cst_14 = arith.constant dense<0.000000e+00> : vector<2x128xf32>
    %19 = tpu.matmul %17, %18, %cst_14 {dimension_numbers = #tpu.dot_dimension_numbers<[1], [0], [0], [1], [0, 0, 1, 1], [], []>} : vector<2x64xbf16>, vector<64x128xbf16>, vector<2x128xf32> -> vector<2x128xf32>
    %c0_15 = arith.constant 0 : index
    %c0_16 = arith.constant 0 : index
    %20 = vector.load %arg7[%c0_15, %c0_16] : memref<2x1xf32, #tpu.memory_space<vmem>>, vector<2x1xf32>
    %21 = vector.broadcast %20 : vector<2x1xf32> to vector<2x128xf32>
    %22 = arith.addf %19, %21 : vector<2x128xf32>
    %23 = math.tanh %22 : vector<2x128xf32>
    %24 = tpu.iota {dimensions = array<i32: 0>} : vector<2x128xi32>
    %c0_i32 = arith.constant 0 : i32
    %25 = vector.broadcast %c0_i32 : i32 to vector<2x128xi32>
    %26 = arith.cmpi eq, %24, %25 : vector<2x128xi32>
    %27 = math.exp %23 : vector<2x128xf32>
    %28 = arith.select %26, %23, %27 : vector<2x128xi1>, vector<2x128xf32>
    %c0_17 = arith.constant 0 : index
    %c0_18 = arith.constant 0 : index
    %29 = vector.load %arg8[%c0_17, %c0_18] : memref<2x128xf32, #tpu.memory_space<vmem>>, vector<2x128xf32>
    tpu.vector_store %arg8[%c0_17, %c0_18], %28 {strides = array<i32>} : memref<2x128xf32, #tpu.memory_space<vmem>>, vector<2x128xf32>,
    return
  }
  func.func @transform_0(%arg0: i32) -> (i32, i32) {
    %c0_i32 = arith.constant 0 : i32
    %c0_i32_0 = arith.constant 0 : i32
    return %c0_i32, %arg0 : i32, i32
  }
  func.func @transform_1(%arg0: i32) -> (i32, i32) {
    %c0_i32 = arith.constant 0 : i32
    %c0_i32_0 = arith.constant 0 : i32
    %c0_i32_1 = arith.constant 0 : i32
    return %c0_i32, %c0_i32_0 : i32, i32
  }
  func.func @transform_2(%arg0: i32) -> (i32, i32) {
    %c0_i32 = arith.constant 0 : i32
    %c0_i32_0 = arith.constant 0 : i32
    %c0_i32_1 = arith.constant 0 : i32
    return %c0_i32, %c0_i32_0 : i32, i32
  }
  func.func @transform_3(%arg0: i32) -> (i32, i32) {
    %c0_i32 = arith.constant 0 : i32
    %c0_i32_0 = arith.constant 0 : i32
    %c0_i32_1 = arith.constant 0 : i32
    return %c0_i32, %c0_i32_0 : i32, i32
  }
  func.func @transform_4(%arg0: i32) -> (i32, i32) {
    %c0_i32 = arith.constant 0 : i32
    %c0_i32_0 = arith.constant 0 : i32
    %c0_i32_1 = arith.constant 0 : i32
    return %c0_i32, %c0_i32_0 : i32, i32
  }
  func.func @transform_5(%arg0: i32) -> (i32, i32) {
    %c0_i32 = arith.constant 0 : i32
    %c0_i32_0 = arith.constant 0 : i32
    %c0_i32_1 = arith.constant 0 : i32
    return %c0_i32, %c0_i32_0 : i32, i32
  }
  func.func @transform_6(%arg0: i32) -> (i32, i32) {
    %c0_i32 = arith.constant 0 : i32
    %c0_i32_0 = arith.constant 0 : i32
    %c0_i32_1 = arith.constant 0 : i32
    return %c0_i32, %c0_i32_0 : i32, i32
  }
  func.func @transform_7(%arg0: i32) -> (i32, i32) {
    %c0_i32 = arith.constant 0 : i32
    %c0_i32_0 = arith.constant 0 : i32
    return %c0_i32, %arg0 : i32, i32
  }
}

</mosaic_0001>

<llo_original>
// kernel: tpu_custom_call.1
$region0: #{tpu_custom_call.1}
  #allocation0 [shape = 'u32[]', space=smem, size = 0x4, offset = 0x4, fixed_abs, tag = 'smem constant byte address 0x4 - core index']
  #allocation1 [shape = 'u32[144,128]{1,0:T(1,128)}', space=vmem, size = 0x12000, scoped, tag = 'internal scratch']
  %s0 = inlined_call_operand.vmem [shape: f32[3,128], index: 0, kind: input, shape index: {}]
  %s1 = inlined_call_operand.vmem [shape: bf16[64,3], index: 1, kind: input, shape index: {}]
  %s2 = inlined_call_operand.vmem [shape: f32[64,1], index: 2, kind: input, shape index: {}]
  %s3 = inlined_call_operand.vmem [shape: bf16[64,64], index: 3, kind: input, shape index: {}]
  %s4 = inlined_call_operand.vmem [shape: f32[64,1], index: 4, kind: input, shape index: {}]
  %s5 = inlined_call_operand.vmem [shape: bf16[2,64], index: 5, kind: input, shape index: {}]
  %s6 = inlined_call_operand.vmem [shape: f32[2,1], index: 6, kind: input, shape index: {}]
  %s7 = inlined_call_operand.hbm [shape: f32[2,128], index: 7, kind: output, shape index: {}]
  %s8 = sld [smem:[#allocation0]]
  $region38: #{tpu_custom_call.1} parent=0
    _
  %s10 = ssub.s32 1, %s8
  %s11 = scalar_select 0, %s10, %s8
  $region1: #{tpu_custom_call.1} parent=0
    #allocation2 [shape = 'u8[1024]{0}', space=vmem, size = 0x400, scoped, tag = 'output window, operand 0, single buffered']
    #allocation3 [shape = 's32[1]{0}', space=sflag, size = 0x4, scoped, tag = 'scoped memory for tpu_custom_call.1']
    %12 = vsyncpa [#allocation3], 0
    // Predicated region
    $region2: #{tpu_custom_call.1} parent=1 // pred_check
      _
    $region3: #{tpu_custom_call.1} parent=1 // pred_check_branch
      %14 = sbr.rel (0) target = $region5
    $region4: #{tpu_custom_call.1} parent=1 // pred_region
      _
    $region5: #{tpu_custom_call.1} parent=1 // pred_fallthru
      _
    // Predicated region
    $region6: #{tpu_custom_call.1} parent=1 // pred_check
      _
    $region7: #{tpu_custom_call.1} parent=1 // pred_check_branch
      %16 = sbr.rel (0) target = $region9
    $region8: #{tpu_custom_call.1} parent=1 // pred_region
      _
    $region9: #{tpu_custom_call.1} parent=1 // pred_fallthru
      _
    // Predicated region
    $region10: #{tpu_custom_call.1} parent=1 // pred_check
      _
    $region11: #{tpu_custom_call.1} parent=1 // pred_check_branch
      %18 = sbr.rel (0) target = $region13
    $region12: #{tpu_custom_call.1} parent=1 // pred_region
      _
    $region13: #{tpu_custom_call.1} parent=1 // pred_fallthru
      _
    // Predicated region
    $region14: #{tpu_custom_call.1} parent=1 // pred_check
      _
    $region15: #{tpu_custom_call.1} parent=1 // pred_check_branch
      %20 = sbr.rel (0) target = $region17
    $region16: #{tpu_custom_call.1} parent=1 // pred_region
      _
    $region17: #{tpu_custom_call.1} parent=1 // pred_fallthru
      _
    // Predicated region
    $region18: #{tpu_custom_call.1} parent=1 // pred_check
      _
    $region19: #{tpu_custom_call.1} parent=1 // pred_check_branch
      %22 = sbr.rel (0) target = $region21
    $region20: #{tpu_custom_call.1} parent=1 // pred_region
      _
    $region21: #{tpu_custom_call.1} parent=1 // pred_fallthru
      _
    // Predicated region
    $region22: #{tpu_custom_call.1} parent=1 // pred_check
      _
    $region23: #{tpu_custom_call.1} parent=1 // pred_check_branch
      %24 = sbr.rel (0) target = $region25
    $region24: #{tpu_custom_call.1} parent=1 // pred_region
      _
    $region25: #{tpu_custom_call.1} parent=1 // pred_fallthru
      _
    // Predicated region
    $region26: #{tpu_custom_call.1} parent=1 // pred_check
      _
    $region27: #{tpu_custom_call.1} parent=1 // pred_check_branch
      %26 = sbr.rel (0) target = $region29
    $region28: #{tpu_custom_call.1} parent=1 // pred_region
      _
    $region29: #{tpu_custom_call.1} parent=1 // pred_fallthru
      _
    %v28 = vld [vmem:[%s0] sm:$0x7]
    %v29 = vpack.c.bf16 %v28, %v28
    %v30 = vld [vmem:[%s1] sm:$0xf]
    %v31 = vld [vmem:[%s1 + $0x4] sm:$0xf]
    %v32 = vld [vmem:[%s1 + $0x8] sm:$0xf]
    %v33 = vld [vmem:[%s1 + $0xc] sm:$0xf]
    %v34 = vld [vmem:[%s1 + $0x10] sm:$0xf]
    %v35 = vld [vmem:[%s1 + $0x14] sm:$0xf]
    %v36 = vld [vmem:[%s1 + $0x18] sm:$0xf]
    %v37 = vld [vmem:[%s1 + $0x1c] sm:$0xf]
    %v38 = vld [vmem:[%s2] sm:$0xff]
    %v39 = vld [vmem:[%s2 + $0x8] sm:$0xff]
    %v40 = vld [vmem:[%s2 + $0x10] sm:$0xff]
    %v41 = vld [vmem:[%s2 + $0x18] sm:$0xff]
    %v42 = vld [vmem:[%s2 + $0x20] sm:$0xff]
    %v43 = vld [vmem:[%s2 + $0x28] sm:$0xff]
    %v44 = vld [vmem:[%s2 + $0x30] sm:$0xff]
    %v45 = vld [vmem:[%s2 + $0x38] sm:$0xff]
    %47 = vset.pattern.permute.xlu0 0
    %48 = vperm.xlu0 %47, %v38
    %v49 = vpop.permute.xlu0 %48
    %52 = vset.pattern.permute.xlu0 0
    %53 = vperm.xlu0 %52, %v39
    %v54 = vpop.permute.xlu0 %53
    %57 = vset.pattern.permute.xlu0 0
    %58 = vperm.xlu0 %57, %v40
    %v59 = vpop.permute.xlu0 %58
    %62 = vset.pattern.permute.xlu0 0
    %63 = vperm.xlu0 %62, %v41
    %v64 = vpop.permute.xlu0 %63
    %67 = vset.pattern.permute.xlu0 0
    %68 = vperm.xlu0 %67, %v42
    %v69 = vpop.permute.xlu0 %68
    %72 = vset.pattern.permute.xlu0 0
    %73 = vperm.xlu0 %72, %v43
    %v74 = vpop.permute.xlu0 %73
    %77 = vset.pattern.permute.xlu0 0
    %78 = vperm.xlu0 %77, %v44
    %v79 = vpop.permute.xlu0 %78
    %82 = vset.pattern.permute.xlu0 0
    %83 = vperm.xlu0 %82, %v45
    %v84 = vpop.permute.xlu0 %83
    %v94 = vunpack.c.l.b16 %v30
    %v95 = vunpack.c.l.b16 %v31
    %v96 = vunpack.c.l.b16 %v32
    %v97 = vunpack.c.l.b16 %v33
    %v98 = vunpack.c.l.b16 %v34
    %v99 = vunpack.c.l.b16 %v35
    %v100 = vunpack.c.l.b16 %v36
    %v101 = vunpack.c.l.b16 %v37
    %v102 = vpack.c.b16 %v95, %v94
    %v103 = vpack.c.b16 %v97, %v96
    %v104 = vpack.c.b16 %v99, %v98
    %v105 = vpack.c.b16 %v101, %v100
    %vm106 = vcmask 23552
    %v108 = vsel %vm106, %v102, 0
    %v111 = vsel %vm106, %v103, 0
    %v114 = vsel %vm106, %v104, 0
    %v117 = vsel %vm106, %v105, 0
    %vm119 = vcmask 1040384
    %vm120 = vcmask 1041408
    %v121 = vsel %vm119, 4294967295, 65535
    %v122 = vsel %vm120, %v121, 0
    %v124 = vand.u32 %v29, %v122
    %126 = vmatprep.subr.bf16.mxu0 0
    %127 = vmatpush1.bf16.msra.mxu0 %v124
    %128 = vmatprep.subr.bf16.mxu0 0
    %129 = vmatpush1.bf16.msra.mxu0 0
    %130 = vmatprep.subr.bf16.mxu0 0
    %131 = vmatpush1.bf16.msra.mxu0 0
    %132 = vmatprep.subr.bf16.mxu0 0
    %133 = vmatpush1.bf16.msra.mxu0 0
    %134 = vmatprep.subr.bf16.mxu0 0
    %135 = vmatpush1.bf16.msra.mxu0 0
    %136 = vmatprep.subr.bf16.mxu0 0
    %137 = vmatpush1.bf16.msra.mxu0 0
    %138 = vmatprep.subr.bf16.mxu0 0
    %139 = vmatpush1.bf16.msra.mxu0 0
    %140 = vmatprep.subr.bf16.mxu0 0
    %141 = vmatpush1.bf16.msra.mxu0 0
    %142 = vmatprep.subr.bf16.mxu0 0
    %143 = vmatpush1.bf16.msra.mxu0 0
    %144 = vmatprep.subr.bf16.mxu0 0
    %145 = vmatpush1.bf16.msra.mxu0 0
    %146 = vmatprep.subr.bf16.mxu0 0
    %147 = vmatpush1.bf16.msra.mxu0 0
    %148 = vmatprep.subr.bf16.mxu0 0
    %149 = vmatpush1.bf16.msra.mxu0 0
    %150 = vmatprep.subr.bf16.mxu0 0
    %151 = vmatpush1.bf16.msra.mxu0 0
    %152 = vmatprep.subr.bf16.mxu0 0
    %153 = vmatpush1.bf16.msra.mxu0 0
    %154 = vmatprep.subr.bf16.mxu0 0
    %155 = vmatpush1.bf16.msra.mxu0 0
    %156 = vmatprep.subr.bf16.mxu0 0
    %157 = vmatpush1.bf16.msra.mxu0 0
    %158 = vmatprep.mubr.bf16.mxu0 0
    %159 = vmatmul.mubr.bf16.gmra.mrb[0].mxu0 %v108
    %v160 = vpop.f32.mrb[0].mxu0
    %v161 = vadd.f32 %v49, %v160
    %v162 = vpop.f32.mrb[0].mxu0
    %v163 = vpop.f32.mrb[0].mxu0
    %v164 = vadd.f32 %v54, %v163
    %v165 = vpop.f32.mrb[0].mxu0
    %166 = vmatprep.mubr.bf16.mxu0 0
    %167 = vmatmul.mubr.bf16.gmra.mrb[0].mxu0 %v111
    %v168 = vpop.f32.mrb[0].mxu0
    %v169 = vadd.f32 %v59, %v168
    %v170 = vpop.f32.mrb[0].mxu0
    %v171 = vpop.f32.mrb[0].mxu0
    %v172 = vadd.f32 %v64, %v171
    %v173 = vpop.f32.mrb[0].mxu0
    %174 = vmatprep.mubr.bf16.mxu0 0
    %175 = vmatmul.mubr.bf16.gmra.mrb[0].mxu0 %v114
    %v176 = vpop.f32.mrb[0].mxu0
    %v177 = vadd.f32 %v69, %v176
    %v178 = vpop.f32.mrb[0].mxu0
    %v179 = vpop.f32.mrb[0].mxu0
    %v180 = vadd.f32 %v74, %v179
    %v181 = vpop.f32.mrb[0].mxu0
    %182 = vmatprep.mubr.bf16.mxu0 0
    %183 = vmatmul.mubr.bf16.gmra.mrb[0].mxu0 %v117
    %v184 = vpop.f32.mrb[0].mxu0
    %v185 = vadd.f32 %v79, %v184
    %v186 = vpop.f32.mrb[0].mxu0
    %v187 = vpop.f32.mrb[0].mxu0
    %v188 = vadd.f32 %v84, %v187
    %v189 = vpop.f32.mrb[0].mxu0
    %190 = vdwg.mxu0
    %v191 = vmax.f32 %v161, 0.0
    %v192 = vmax.f32 %v164, 0.0
    %v193 = vmax.f32 %v169, 0.0
    %v194 = vmax.f32 %v172, 0.0
    %v195 = vmax.f32 %v177, 0.0
    %v196 = vmax.f32 %v180, 0.0
    %v197 = vmax.f32 %v185, 0.0
    %v198 = vmax.f32 %v188, 0.0
    %v199 = vld [vmem:[%s3] sm:$0xf]
    %v200 = vld [vmem:[%s3 + $0x4] sm:$0xf]
    %v201 = vld [vmem:[%s3 + $0x8] sm:$0xf]
    %v202 = vld [vmem:[%s3 + $0xc] sm:$0xf]
    %v203 = vld [vmem:[%s3 + $0x10] sm:$0xf]
    %v204 = vld [vmem:[%s3 + $0x14] sm:$0xf]
    %v205 = vld [vmem:[%s3 + $0x18] sm:$0xf]
    %v206 = vld [vmem:[%s3 + $0x1c] sm:$0xf]
    %v207 = vpack.c.bf16 %v192, %v191
    %v208 = vpack.c.bf16 %v194, %v193
    %v209 = vpack.c.bf16 %v196, %v195
    %v210 = vpack.c.bf16 %v198, %v197
    %v211 = vld [vmem:[%s4] sm:$0xff]
    %v212 = vld [vmem:[%s4 + $0x8] sm:$0xff]
    %v213 = vld [vmem:[%s4 + $0x10] sm:$0xff]
    %v214 = vld [vmem:[%s4 + $0x18] sm:$0xff]
    %v215 = vld [vmem:[%s4 + $0x20] sm:$0xff]
    %v216 = vld [vmem:[%s4 + $0x28] sm:$0xff]
    %v217 = vld [vmem:[%s4 + $0x30] sm:$0xff]
    %v218 = vld [vmem:[%s4 + $0x38] sm:$0xff]
    %220 = vset.pattern.permute.xlu0 0
    %221 = vperm.xlu0 %220, %v211
    %v222 = vpop.permute.xlu0 %221
    %225 = vset.pattern.permute.xlu0 0
    %226 = vperm.xlu0 %225, %v212
    %v227 = vpop.permute.xlu0 %226
    %230 = vset.pattern.permute.xlu0 0
    %231 = vperm.xlu0 %230, %v213
    %v232 = vpop.permute.xlu0 %231
    %235 = vset.pattern.permute.xlu0 0
    %236 = vperm.xlu0 %235, %v214
    %v237 = vpop.permute.xlu0 %236
    %240 = vset.pattern.permute.xlu0 0
    %241 = vperm.xlu0 %240, %v215
    %v242 = vpop.permute.xlu0 %241
    %245 = vset.pattern.permute.xlu0 0
    %246 = vperm.xlu0 %245, %v216
    %v247 = vpop.permute.xlu0 %246
    %250 = vset.pattern.permute.xlu0 0
    %251 = vperm.xlu0 %250, %v217
    %v252 = vpop.permute.xlu0 %251
    %255 = vset.pattern.permute.xlu0 0
    %256 = vperm.xlu0 %255, %v218
    %v257 = vpop.permute.xlu0 %256
    %v267 = vunpack.c.l.b16 %v199
    %v268 = vunpack.c.l.b16 %v200
    %v269 = vunpack.c.l.b16 %v201
    %v270 = vunpack.c.l.b16 %v202
    %v271 = vunpack.c.l.b16 %v203
    %v272 = vunpack.c.l.b16 %v204
    %v273 = vunpack.c.l.b16 %v205
    %v274 = vunpack.c.l.b16 %v206
    %v275 = vpack.c.b16 %v268, %v267
    %v276 = vpack.c.b16 %v270, %v269
    %v277 = vpack.c.b16 %v272, %v271
    %v278 = vpack.c.b16 %v274, %v273
    %vm279 = vcmask 523264
    %v281 = vsel %vm279, %v275, 0
    %v284 = vsel %vm279, %v276, 0
    %v287 = vsel %vm279, %v277, 0
    %v290 = vsel %vm279, %v278, 0
    %292 = vmatprep.subr.bf16.mxu0 0
    %293 = vmatpush1.bf16.msra.mxu0 %v207
    %294 = vmatprep.subr.bf16.mxu0 0
    %295 = vmatpush1.bf16.msra.mxu0 %v208
    %296 = vmatprep.subr.bf16.mxu0 0
    %297 = vmatpush1.bf16.msra.mxu0 %v209
    %298 = vmatprep.subr.bf16.mxu0 0
    %299 = vmatpush1.bf16.msra.mxu0 %v210
    %300 = vmatprep.subr.bf16.mxu0 0
    %301 = vmatpush1.bf16.msra.mxu0 0
    %302 = vmatprep.subr.bf16.mxu0 0
    %303 = vmatpush1.bf16.msra.mxu0 0
    %304 = vmatprep.subr.bf16.mxu0 0
    %305 = vmatpush1.bf16.msra.mxu0 0
    %306 = vmatprep.subr.bf16.mxu0 0
    %307 = vmatpush1.bf16.msra.mxu0 0
    %308 = vmatprep.subr.bf16.mxu0 0
    %309 = vmatpush1.bf16.msra.mxu0 0
    %310 = vmatprep.subr.bf16.mxu0 0
    %311 = vmatpush1.bf16.msra.mxu0 0
    %312 = vmatprep.subr.bf16.mxu0 0
    %313 = vmatpush1.bf16.msra.mxu0 0
    %314 = vmatprep.subr.bf16.mxu0 0
    %315 = vmatpush1.bf16.msra.mxu0 0
    %316 = vmatprep.subr.bf16.mxu0 0
    %317 = vmatpush1.bf16.msra.mxu0 0
    %318 = vmatprep.subr.bf16.mxu0 0
    %319 = vmatpush1.bf16.msra.mxu0 0
    %320 = vmatprep.subr.bf16.mxu0 0
    %321 = vmatpush1.bf16.msra.mxu0 0
    %322 = vmatprep.subr.bf16.mxu0 0
    %323 = vmatpush1.bf16.msra.mxu0 0
    %324 = vmatprep.mubr.bf16.mxu0 0
    %325 = vmatmul.mubr.bf16.gmra.mrb[0].mxu0 %v281
    %v326 = vpop.f32.mrb[0].mxu0
    %v327 = vadd.f32 %v222, %v326
    %v328 = vpop.f32.mrb[0].mxu0
    %v329 = vpop.f32.mrb[0].mxu0
    %v330 = vadd.f32 %v227, %v329
    %v331 = vpop.f32.mrb[0].mxu0
    %332 = vmatprep.mubr.bf16.mxu0 0
    %333 = vmatmul.mubr.bf16.gmra.mrb[0].mxu0 %v284
    %v334 = vpop.f32.mrb[0].mxu0
    %v335 = vadd.f32 %v232, %v334
    %v336 = vpop.f32.mrb[0].mxu0
    %v337 = vpop.f32.mrb[0].mxu0
    %v338 = vadd.f32 %v237, %v337
    %v339 = vpop.f32.mrb[0].mxu0
    %340 = vmatprep.mubr.bf16.mxu0 0
    %341 = vmatmul.mubr.bf16.gmra.mrb[0].mxu0 %v287
    %v342 = vpop.f32.mrb[0].mxu0
    %v343 = vadd.f32 %v242, %v342
    %v344 = vpop.f32.mrb[0].mxu0
    %v345 = vpop.f32.mrb[0].mxu0
    %v346 = vadd.f32 %v247, %v345
    %v347 = vpop.f32.mrb[0].mxu0
    %348 = vmatprep.mubr.bf16.mxu0 0
    %349 = vmatmul.mubr.bf16.gmra.mrb[0].mxu0 %v290
    %v350 = vpop.f32.mrb[0].mxu0
    %v351 = vadd.f32 %v252, %v350
    %v352 = vpop.f32.mrb[0].mxu0
    %v353 = vpop.f32.mrb[0].mxu0
    %v354 = vadd.f32 %v257, %v353
    %v355 = vpop.f32.mrb[0].mxu0
    %356 = vdwg.mxu0
    %v357 = vmax.f32 %v327, 0.0
    %v358 = vmax.f32 %v330, 0.0
    %v359 = vmax.f32 %v335, 0.0
    %v360 = vmax.f32 %v338, 0.0
    %v361 = vmax.f32 %v343, 0.0
    %v362 = vmax.f32 %v346, 0.0
    %v363 = vmax.f32 %v351, 0.0
    %v364 = vmax.f32 %v354, 0.0
    %v365 = vld [vmem:[%s5] sm:$0x1]
    %v366 = vpack.c.bf16 %v358, %v357
    %v367 = vpack.c.bf16 %v360, %v359
    %v368 = vpack.c.bf16 %v362, %v361
    %v369 = vpack.c.bf16 %v364, %v363
    %v370 = vld [vmem:[%s6] sm:$0x3]
    %372 = vset.pattern.permute.xlu0 0
    %373 = vperm.xlu0 %372, %v370
    %v374 = vpop.permute.xlu0 %373
    %v377 = vsel %vm279, %v365, 0
    %379 = vmatprep.subr.bf16.mxu0 0
    %380 = vmatpush1.bf16.msra.mxu0 %v366
    %381 = vmatprep.subr.bf16.mxu0 0
    %382 = vmatpush1.bf16.msra.mxu0 %v367
    %383 = vmatprep.subr.bf16.mxu0 0
    %384 = vmatpush1.bf16.msra.mxu0 %v368
    %385 = vmatprep.subr.bf16.mxu0 0
    %386 = vmatpush1.bf16.msra.mxu0 %v369
    %387 = vmatprep.subr.bf16.mxu0 0
    %388 = vmatpush1.bf16.msra.mxu0 0
    %389 = vmatprep.subr.bf16.mxu0 0
    %390 = vmatpush1.bf16.msra.mxu0 0
    %391 = vmatprep.subr.bf16.mxu0 0
    %392 = vmatpush1.bf16.msra.mxu0 0
    %393 = vmatprep.subr.bf16.mxu0 0
    %394 = vmatpush1.bf16.msra.mxu0 0
    %395 = vmatprep.subr.bf16.mxu0 0
    %396 = vmatpush1.bf16.msra.mxu0 0
    %397 = vmatprep.subr.bf16.mxu0 0
    %398 = vmatpush1.bf16.msra.mxu0 0
    %399 = vmatprep.subr.bf16.mxu0 0
    %400 = vmatpush1.bf16.msra.mxu0 0
    %401 = vmatprep.subr.bf16.mxu0 0
    %402 = vmatpush1.bf16.msra.mxu0 0
    %403 = vmatprep.subr.bf16.mxu0 0
    %404 = vmatpush1.bf16.msra.mxu0 0
    %405 = vmatprep.subr.bf16.mxu0 0
    %406 = vmatpush1.bf16.msra.mxu0 0
    %407 = vmatprep.subr.bf16.mxu0 0
    %408 = vmatpush1.bf16.msra.mxu0 0
    %409 = vmatprep.subr.bf16.mxu0 0
    %410 = vmatpush1.bf16.msra.mxu0 0
    %411 = vmatprep.mubr.bf16.mxu0 0
    %412 = vmatmul.mubr.bf16.gmra.mrb[0].mxu0 %v377
    %v413 = vpop.f32.mrb[0].mxu0
    %v414 = vadd.f32 %v374, %v413
    %v415 = vpop.f32.mrb[0].mxu0
    %v416 = vpop.f32.mrb[0].mxu0
    %v417 = vpop.f32.mrb[0].mxu0
    %418 = vdwg.mxu0
    %v419 = vtanh.pop %v414
    %v420 = vlaneseq
    %v421 = vshrl.u32 %v420, 7
    %vm422 = vcmp.eq.s32.totalorder %v421, 0
    %v423 = vmul.f32 %v419, 1.442695
    %v424 = vpow.pop %v423
    %v425 = vsel %vm422, %v419, %v424
    %426 = vst [vmem:[#allocation2] sm:$0x3] %v425
    // Predicated region
    $region30: #{tpu_custom_call.1} parent=1 // pred_check
      _
    $region31: #{tpu_custom_call.1} parent=1 // pred_check_branch
      %428 = sbr.rel (0) target = $region33
    $region32: #{tpu_custom_call.1} parent=1 // pred_region
      %s430 = ssub.s32 32, 32
      %431 = vsyncadd [#allocation3], %s430
      %s433 = sshll.u32 [#allocation2], 4
      %s434 = int_to_ptr.vmem [resolvable:$true] %s433
      %436 = dma.vmem_to_hbm [thread:$0]  %s434, 32, %s7, [#allocation3]
    $region33: #{tpu_custom_call.1} parent=1 // pred_fallthru
      _
    // Predicated region
    $region34: #{tpu_custom_call.1} parent=1 // pred_check
      _
    $region35: #{tpu_custom_call.1} parent=1 // pred_check_branch
      %438 = sbr.rel (0) target = $region37
    $region36: #{tpu_custom_call.1} parent=1 // pred_region
      %439 = dma.done [#allocation3], 32
    $region37: #{tpu_custom_call.1} parent=1 // pred_fallthru
      _
    %440 = vsyncpa [#allocation3], 1

</llo_original>
